<compile_context>
chip_gen: v5e
topology: v5e:2x2
jax: 0.10.0
libtpu: 0.0.40
codegen_flags: <defaults>
</compile_context>

<pallas_src>
import jax
import jax.numpy as jnp
from jax import lax
from jax.experimental import pallas as pl
from jax.experimental.pallas import tpu as pltpu

EPS = 1e-5  # nn.LayerNorm default eps


def output_layer_kernel(x_ref, w1_ref, b1_ref, g_ref, be_ref, wf2_ref, bf2_ref, o_ref):
    # Per grid step (one batch item):
    #   x_ref  : (C*T, N)   activation slab, N on lanes (native NCHW layout)
    #   w1_ref : (C, C*T)   tconv1 weight, (ci, t)-flattened to match x rows
    #   b1_ref : (C, 1)     tconv1 bias
    #   g_ref  : (C, N)     LayerNorm gamma (transposed once on host)
    #   be_ref : (C, N)     LayerNorm beta
    #   wf2_ref: (C, 1)     folded tconv2+fc weight  (wf @ w2)
    #   bf2_ref: (1,) SMEM  folded tconv2+fc bias    (wf . b2 + bf)
    #   o_ref  : (1, N)     lane-dense output row
    C, N = g_ref.shape

    # --- tconv1: single MXU matmul, contraction over C*T, N stays on lanes ---
    t1 = jnp.dot(w1_ref[...], x_ref[...], preferred_element_type=jnp.float32)
    t1 = t1 + b1_ref[...]                                            # (C, N)

    # --- LayerNorm([n, c]): joint stats over all N*C elements of this item ---
    inv_cnt = 1.0 / (C * N)
    s = jnp.sum(t1, keepdims=True)                                   # (1, 1)
    ss = jnp.sum(t1 * t1, keepdims=True)                             # (1, 1)
    mean = s * inv_cnt
    var = ss * inv_cnt - mean * mean
    x_ln = (t1 - mean) * lax.rsqrt(var + EPS) * g_ref[...] + be_ref[...]   # (C, N)

    # --- tconv2 folded into fc: weighted reduce over C -> (1, N), N on lanes ---
    out = jnp.sum(x_ln * wf2_ref[...], axis=0, keepdims=True) + bf2_ref[0]
    o_ref[...] = out.astype(o_ref.dtype)


def output_layer(x_nchw, params):
    """x_nchw: (B, C, T, N) float32 (PyTorch layout).  Returns (B, 1, 1, N) float32."""
    B, C, T, N = x_nchw.shape
    w1, b1, gamma, beta, w2, b2, wf, bf = params
    # w1: (C_out, C_in, T), b1: (C,), gamma/beta: (N, C), w2: (C_out, C_in),
    # b2: (C,), wf: (C,), bf: (1,)

    # Layout prep: the activation is only *reshaped* (free, contiguous); all
    # transposes / algebraic folds touch only the tiny weights, once.
    x3d = x_nchw.reshape(B, C * T, N)                # rows flatten as (ci, t)
    w1p = w1.reshape(C, C * T)                       # (co, ci*T + t) matches x rows
    b1c = b1.reshape(C, 1)
    g_cn = gamma.T                                   # (C, N)
    be_cn = beta.T                                   # (C, N)
    wf2 = jnp.dot(wf, w2).reshape(C, 1)              # fold tconv2 into fc (exact)
    bf2 = (jnp.dot(wf, b2) + bf[0]).reshape(1)

    def resident(shape):                             # fetched once, VMEM-resident
        return pl.BlockSpec(shape, lambda b: (0, 0))

    out = pl.pallas_call(
        output_layer_kernel,
        out_shape=jax.ShapeDtypeStruct((B, 1, N), jnp.float32),
        grid_spec=pltpu.PrefetchScalarGridSpec(
            num_scalar_prefetch=0,
            grid=(B,),                               # one batch item per step -> pipelined
            in_specs=[
                pl.BlockSpec((pl.Squeezed(), C * T, N), lambda b: (b, 0, 0)),  # x[b]
                resident((C, C * T)),                # w1'
                resident((C, 1)),                    # b1
                resident((C, N)),                    # gamma^T
                resident((C, N)),                    # beta^T
                resident((C, 1)),                    # wf2 (tconv2+fc fold)
                pl.BlockSpec(memory_space=pltpu.MemorySpace.SMEM),  # bf2 scalar
            ],
            out_specs=pl.BlockSpec((pl.Squeezed(), 1, N), lambda b: (b, 0, 0)),
        ),
        compiler_params=pltpu.CompilerParams(
            dimension_semantics=("parallel",),       # megacore-shards batch on v7x
        ),
    )(x3d, w1p, b1c, g_cn, be_cn, wf2, bf2)

    return out.reshape(B, 1, 1, N)                   # PyTorch output layout


def ref_forward_nchw(x_nchw, w1, b1, gamma, beta, w2, b2, wf, bf):
    """Pure-JAX reference of the PyTorch module (unfolded params, NCHW in/out)."""
    t1 = jnp.einsum("bctn,dct->bdn", x_nchw, w1) + b1[None, :, None]   # (B, C, N)
    t1 = jnp.transpose(t1, (0, 2, 1))                                  # (B, N, C)
    mean = jnp.mean(t1, axis=(1, 2), keepdims=True)
    var = jnp.mean((t1 - mean) ** 2, axis=(1, 2), keepdims=True)
    x_ln = (t1 - mean) / jnp.sqrt(var + EPS) * gamma + beta            # (B, N, C)
    t2 = jnp.einsum("bnc,dc->bnd", x_ln, w2) + b2                      # (B, N, C)
    out = jnp.einsum("bnc,c->bn", t2, wf) + bf[0]                      # (B, N)
    return out[:, None, None, :]                                       # (B, 1, 1, N)


if __name__ == "__main__":
    # Small shapes consistent with the module: c channels, T kernel size, n nodes.
    B, C, T, N = 2, 8, 4, 16

    key = jax.random.PRNGKey(0)
    ks = jax.random.split(key, 9)

    # PyTorch-layout input (B, C, T, N)
    x_nchw = jax.random.normal(ks[0], (B, C, T, N), jnp.float32)

    # Torch weight layouts re-expressed:
    #   tconv1.weight (c, c, T, 1) -> w1[co, ci, t]
    #   tconv2.weight (c, c, 1, 1) -> w2[co, ci]
    #   fc.weight (1, c, 1, 1)     -> wf[ci]
    w1 = 0.1 * jax.random.normal(ks[1], (C, C, T), jnp.float32)
    b1 = 0.1 * jax.random.normal(ks[2], (C,), jnp.float32)
    gamma = 1.0 + 0.1 * jax.random.normal(ks[3], (N, C), jnp.float32)
    beta = 0.1 * jax.random.normal(ks[4], (N, C), jnp.float32)
    w2 = 0.1 * jax.random.normal(ks[5], (C, C), jnp.float32)
    b2 = 0.1 * jax.random.normal(ks[6], (C,), jnp.float32)
    wf = 0.1 * jax.random.normal(ks[7], (C,), jnp.float32)
    bf = 0.1 * jax.random.normal(ks[8], (1,), jnp.float32)

    params = (w1, b1, gamma, beta, w2, b2, wf, bf)

    out = output_layer(x_nchw, params)
    out = jax.block_until_ready(out)                  # (B, 1, 1, N)

    ref = ref_forward_nchw(x_nchw, *params)
    assert out.shape == (B, 1, 1, N)
    assert jnp.allclose(out, ref, rtol=1e-4, atol=1e-4), "mismatch vs pure-JAX reference"
    print("KERNEL_OK")
</pallas_src>

<mosaic_0001>
module attributes {stable_mosaic.version = 11 : i64} {
  func.func @output_layer_kernel(%arg0: i32, %arg1: memref<1x32x16xf32, #tpu.memory_space<vmem>>, %arg2: memref<8x32xf32, #tpu.memory_space<vmem>>, %arg3: memref<8x1xf32, #tpu.memory_space<vmem>>, %arg4: memref<8x16xf32, #tpu.memory_space<vmem>>, %arg5: memref<8x16xf32, #tpu.memory_space<vmem>>, %arg6: memref<8x1xf32, #tpu.memory_space<vmem>>, %arg7: memref<1xf32, #tpu.memory_space<smem>>, %arg8: memref<1x1x16xf32, #tpu.memory_space<vmem>>) attributes {dimension_semantics = [#tpu.dimension_semantics<parallel>], iteration_bounds = array<i64: 2>, scalar_prefetch = 0 : i64, scratch_operands = 0 : i64, tpu.core_type = #tpu.core_type<tc>, window_params = [{transform_indices = @transform_0, window_bounds = array<i64: 1, 32, 16>}, {pipeline_mode = #tpu.pipeline_mode<synchronous>, transform_indices = @transform_1, window_bounds = array<i64: 8, 32>}, {pipeline_mode = #tpu.pipeline_mode<synchronous>, transform_indices = @transform_2, window_bounds = array<i64: 8, 1>}, {pipeline_mode = #tpu.pipeline_mode<synchronous>, transform_indices = @transform_3, window_bounds = array<i64: 8, 16>}, {pipeline_mode = #tpu.pipeline_mode<synchronous>, transform_indices = @transform_4, window_bounds = array<i64: 8, 16>}, {pipeline_mode = #tpu.pipeline_mode<synchronous>, transform_indices = @transform_5, window_bounds = array<i64: 8, 1>}, {transform_indices = @transform_6, window_bounds = array<i64: 1>}, {transform_indices = @transform_7, window_bounds = array<i64: 1, 1, 16>}]} {
    %c0 = arith.constant 0 : index
    %c0_0 = arith.constant 0 : index
    %0 = vector.load %arg2[%c0, %c0_0] : memref<8x32xf32, #tpu.memory_space<vmem>>, vector<8x32xf32>
    %c0_1 = arith.constant 0 : index
    %c0_2 = arith.constant 0 : index
    %c0_3 = arith.constant 0 : index
    %1 = vector.load %arg1[%c0_1, %c0_2, %c0_3] : memref<1x32x16xf32, #tpu.memory_space<vmem>>, vector<1x32x16xf32>
    %2 = vector.shape_cast %1 : vector<1x32x16xf32> to vector<32x16xf32>
    %cst = arith.constant dense<0.000000e+00> : vector<8x16xf32>
    %3 = tpu.matmul %0, %2, %cst {dimension_numbers = #tpu.dot_dimension_numbers<[1], [0], [0], [1], [0, 0, 1, 1], [], []>} : vector<8x32xf32>, vector<32x16xf32>, vector<8x16xf32> -> vector<8x16xf32>
    %c0_4 = arith.constant 0 : index
    %c0_5 = arith.constant 0 : index
    %4 = vector.load %arg3[%c0_4, %c0_5] : memref<8x1xf32, #tpu.memory_space<vmem>>, vector<8x1xf32>
    %5 = vector.broadcast %4 : vector<8x1xf32> to vector<8x16xf32>
    %6 = arith.addf %3, %5 : vector<8x16xf32>
    %7 = vector.shape_cast %6 : vector<8x16xf32> to vector<1x8x16xf32>
    %cst_6 = arith.constant dense<0.000000e+00> : vector<1xf32>
    %8 = vector.multi_reduction <add>, %7, %cst_6 [1, 2] : vector<1x8x16xf32> to vector<1xf32>
    %9 = vector.shape_cast %8 : vector<1xf32> to vector<1x1x1xf32>
    %10 = vector.extract %9[0, 0, 0] : f32 from vector<1x1x1xf32>
    %11 = vector.broadcast %10 : f32 to vector<1x1xf32>
    %12 = arith.mulf %6, %6 : vector<8x16xf32>
    %13 = vector.shape_cast %12 : vector<8x16xf32> to vector<1x8x16xf32>
    %cst_7 = arith.constant dense<0.000000e+00> : vector<1xf32>
    %14 = vector.multi_reduction <add>, %13, %cst_7 [1, 2] : vector<1x8x16xf32> to vector<1xf32>
    %15 = vector.shape_cast %14 : vector<1xf32> to vector<1x1x1xf32>
    %16 = vector.extract %15[0, 0, 0] : f32 from vector<1x1x1xf32>
    %17 = vector.broadcast %16 : f32 to vector<1x1xf32>
    %cst_8 = arith.constant 7.812500e-03 : f32
    %18 = vector.broadcast %cst_8 : f32 to vector<1x1xf32>
    %19 = arith.mulf %11, %18 : vector<1x1xf32>
    %cst_9 = arith.constant 7.812500e-03 : f32
    %20 = vector.broadcast %cst_9 : f32 to vector<1x1xf32>
    %21 = arith.mulf %17, %20 : vector<1x1xf32>
    %22 = arith.mulf %19, %19 : vector<1x1xf32>
    %23 = arith.subf %21, %22 : vector<1x1xf32>
    %24 = vector.broadcast %19 : vector<1x1xf32> to vector<8x16xf32>
    %25 = arith.subf %6, %24 : vector<8x16xf32>
    %cst_10 = arith.constant 9.99999974E-6 : f32
    %26 = vector.broadcast %cst_10 : f32 to vector<1x1xf32>
    %27 = arith.addf %23, %26 : vector<1x1xf32>
    %28 = math.rsqrt %27 : vector<1x1xf32>
    %29 = vector.broadcast %28 : vector<1x1xf32> to vector<8x16xf32>
    %30 = arith.mulf %25, %29 : vector<8x16xf32>
    %c0_11 = arith.constant 0 : index
    %c0_12 = arith.constant 0 : index
    %31 = vector.load %arg4[%c0_11, %c0_12] : memref<8x16xf32, #tpu.memory_space<vmem>>, vector<8x16xf32>
    %32 = arith.mulf %30, %31 : vector<8x16xf32>
    %c0_13 = arith.constant 0 : index
    %c0_14 = arith.constant 0 : index
    %33 = vector.load %arg5[%c0_13, %c0_14] : memref<8x16xf32, #tpu.memory_space<vmem>>, vector<8x16xf32>
    %34 = arith.addf %32, %33 : vector<8x16xf32>
    %c0_15 = arith.constant 0 : index
    %c0_16 = arith.constant 0 : index
    %35 = vector.load %arg6[%c0_15, %c0_16] : memref<8x1xf32, #tpu.memory_space<vmem>>, vector<8x1xf32>
    %36 = vector.broadcast %35 : vector<8x1xf32> to vector<8x16xf32>
    %37 = arith.mulf %34, %36 : vector<8x16xf32>
    %cst_17 = arith.constant dense<0.000000e+00> : vector<16xf32>
    %38 = vector.multi_reduction <add>, %37, %cst_17 [0] : vector<8x16xf32> to vector<16xf32>
    %39 = vector.shape_cast %38 : vector<16xf32> to vector<1x16xf32>
    %c0_18 = arith.constant 0 : index
    %40 = memref.load %arg7[%c0_18] : memref<1xf32, #tpu.memory_space<smem>>
    %41 = vector.broadcast %40 : f32 to vector<1x16xf32>
    %42 = arith.addf %39, %41 : vector<1x16xf32>
    %c0_19 = arith.constant 0 : index
    %c0_20 = arith.constant 0 : index
    %c0_21 = arith.constant 0 : index
    %43 = vector.load %arg8[%c0_19, %c0_20, %c0_21] : memref<1x1x16xf32, #tpu.memory_space<vmem>>, vector<1x1x16xf32>
    %44 = vector.shape_cast %43 : vector<1x1x16xf32> to vector<1x16xf32>
    %45 = vector.shape_cast %42 : vector<1x16xf32> to vector<1x1x16xf32>
    tpu.vector_store %arg8[%c0_19, %c0_20, %c0_21], %45 {strides = array<i32>} : memref<1x1x16xf32, #tpu.memory_space<vmem>>, vector<1x1x16xf32>,
    return
  }
  func.func @transform_0(%arg0: i32) -> (i32, i32, i32) {
    %c0_i32 = arith.constant 0 : i32
    %c0_i32_0 = arith.constant 0 : i32
    %c0_i32_1 = arith.constant 0 : i32
    return %arg0, %c0_i32, %c0_i32_0 : i32, i32, i32
  }
  func.func @transform_1(%arg0: i32) -> (i32, i32) {
    %c0_i32 = arith.constant 0 : i32
    %c0_i32_0 = arith.constant 0 : i32
    %c0_i32_1 = arith.constant 0 : i32
    return %c0_i32, %c0_i32_0 : i32, i32
  }
  func.func @transform_2(%arg0: i32) -> (i32, i32) {
    %c0_i32 = arith.constant 0 : i32
    %c0_i32_0 = arith.constant 0 : i32
    %c0_i32_1 = arith.constant 0 : i32
    return %c0_i32, %c0_i32_0 : i32, i32
  }
  func.func @transform_3(%arg0: i32) -> (i32, i32) {
    %c0_i32 = arith.constant 0 : i32
    %c0_i32_0 = arith.constant 0 : i32
    %c0_i32_1 = arith.constant 0 : i32
    return %c0_i32, %c0_i32_0 : i32, i32
  }
  func.func @transform_4(%arg0: i32) -> (i32, i32) {
    %c0_i32 = arith.constant 0 : i32
    %c0_i32_0 = arith.constant 0 : i32
    %c0_i32_1 = arith.constant 0 : i32
    return %c0_i32, %c0_i32_0 : i32, i32
  }
  func.func @transform_5(%arg0: i32) -> (i32, i32) {
    %c0_i32 = arith.constant 0 : i32
    %c0_i32_0 = arith.constant 0 : i32
    %c0_i32_1 = arith.constant 0 : i32
    return %c0_i32, %c0_i32_0 : i32, i32
  }
  func.func @transform_6(%arg0: i32) -> i32 {
    %c0_i32 = arith.constant 0 : i32
    %c0_i32_0 = arith.constant 0 : i32
    return %c0_i32 : i32
  }
  func.func @transform_7(%arg0: i32) -> (i32, i32, i32) {
    %c0_i32 = arith.constant 0 : i32
    %c0_i32_0 = arith.constant 0 : i32
    %c0_i32_1 = arith.constant 0 : i32
    return %arg0, %c0_i32, %c0_i32_0 : i32, i32, i32
  }
}

</mosaic_0001>

<llo_original>
// kernel: tpu_custom_call.1
$region0: #{tpu_custom_call.1}
  #allocation0 [shape = 'u32[]', space=smem, size = 0x4, offset = 0x4, fixed_abs, tag = 'smem constant byte address 0x4 - core index']
  #allocation1 [shape = 'u32[72,128]{1,0:T(1,128)}', space=vmem, size = 0x9000, scoped, tag = 'internal scratch']
  #allocation2 [shape = 'f32[1]{0:T(128)S(6)}', space=smem, size = 0x200, scoped, tag = 'scoped memory for tpu_custom_call.1']
  %s0 = inlined_call_operand.vmem [shape: f32[2,32,16], index: 0, kind: input, shape index: {}]
  %s1 = inlined_call_operand.vmem [shape: f32[8,32], index: 1, kind: input, shape index: {}]
  %s2 = inlined_call_operand.vmem [shape: f32[8,1], index: 2, kind: input, shape index: {}]
  %s3 = inlined_call_operand.vmem [shape: f32[8,16], index: 3, kind: input, shape index: {}]
  %s4 = inlined_call_operand.vmem [shape: f32[8,16], index: 4, kind: input, shape index: {}]
  %s5 = inlined_call_operand.vmem [shape: f32[8,1], index: 5, kind: input, shape index: {}]
  %s6 = inlined_call_operand.<no memory space> [shape: f32[1], index: 6, kind: input, shape index: {}]
  %s7 = inlined_call_operand.hbm [shape: f32[2,1,16], index: 7, kind: output, shape index: {}]
  %s8 = sld [smem:[#allocation0]]
  $region61: #{tpu_custom_call.1} parent=0
    _
  %s10 = ssub.s32 1, %s8
  %s11 = scalar_select 0, %s10, %s8
  %12 = sst [smem:[#allocation2]] %s6
  $region1: #{tpu_custom_call.1} parent=0
    #allocation3 [shape = 'u8[1024]{0}', space=vmem, size = 0x400, scoped, tag = 'output window, operand 0']
    #allocation4 [shape = 's32[2]{0}', space=sflag, size = 0x8, scoped, tag = 'scoped memory for tpu_custom_call.1']
    %13 = vsyncpa [#allocation4], 0
    %s14 = scalar_lea.sflag [#allocation4], 1
    %15 = vsyncpa %s14, 0
    loop: start=0, step=1, limit=4
    $region2: #{tpu_custom_call.1} parent=1 // loop_pre_header
      _
    $region3: #{tpu_custom_call.1} parent=1 // loop_header
      %s17 = sphi 0, %s21
      %p18 = scmp.ge.s32.totalorder %s17, 4
      %s27 = sphi 0, %s29
      %s30 = sphi 0, %s27
      %s31 = sphi 0, %s30
      %s47 = sphi 0, %s31
      %s51 = sphi 0, %s51
      %s53 = sphi 0, %s51
      %s54 = sphi 0, %s53
      %s68 = sphi 0, %s54
      %s72 = sphi 0, %s72
      %s74 = sphi 0, %s72
      %s75 = sphi 0, %s74
      %s89 = sphi 0, %s75
      %s93 = sphi 0, %s93
      %s95 = sphi 0, %s93
      %s96 = sphi 0, %s95
      %s110 = sphi 0, %s96
      %s114 = sphi 0, %s114
      %s116 = sphi 0, %s114
      %s117 = sphi 0, %s116
      %s131 = sphi 0, %s117
      %s135 = sphi 0, %s135
      %s137 = sphi 0, %s135
      %s138 = sphi 0, %s137
      %s152 = sphi 0, %s138
      %s156 = sphi 0, %s156
      %s158 = sphi 0, %s156
      %s159 = sphi 0, %s158
      %s173 = sphi 0, %s159
      %s179 = sphi 0, %s181
      %s182 = sphi 0, %s179
      %s183 = sphi 0, %s182
      %s199 = sphi 0, %s183
    $region4: #{tpu_custom_call.1} parent=1 // loop_header_branch
      %20 = sbr.rel (%p18) target = $region8
    $region5: #{tpu_custom_call.1} parent=1 // loop_body
      %s22 = ssub.s32 %s17, 1
      %s23 = ssub.s32 %s17, 2
      %s24 = sadd.s32 %s17, 1
      %s25 = ssub.s32 %s17, %s24
      %p26 = scmp.eq.s32.totalorder %s25, 0
      %s28 = sadd.s32 %s27, 1
      %s29 = scalar_select %p26, %s27, %s28
      %p32 = pneg %p26
      %p33 = scmp.eq.s32.totalorder %s17, 1
      %p34 = por %p32, %p33
      %p35 = scmp.ne.s32.totalorder %s27, %s30
      %p36 = scmp.eq.s32.totalorder %s17, 0
      %p37 = por %p35, %p36
      %p38 = scmp.ne.s32.totalorder %s27, %s30
      %p39 = scmp.eq.s32.totalorder %s22, 1
      %p40 = por %p38, %p39
      %p41 = scmp.ne.s32.totalorder %s30, %s31
      %p42 = scmp.eq.s32.totalorder %s22, 0
      %p43 = por %p41, %p42
      %p44 = scmp.ne.s32.totalorder %s30, %s31
      %p45 = scmp.eq.s32.totalorder %s23, 1
      %p46 = por %p44, %p45
      %p48 = scmp.ne.s32.totalorder %s31, %s47
      %p49 = scmp.eq.s32.totalorder %s23, 0
      %p50 = por %p48, %p49
      %s52 = sadd.s32 %s51, 1
      %p55 = scmp.eq.s32.totalorder %s17, 1
      %p56 = scmp.ne.s32.totalorder %s51, %s53
      %p57 = scmp.eq.s32.totalorder %s17, 0
      %p58 = por %p56, %p57
      %p59 = scmp.ne.s32.totalorder %s51, %s53
      %p60 = scmp.eq.s32.totalorder %s22, 1
      %p61 = por %p59, %p60
      %p62 = scmp.ne.s32.totalorder %s53, %s54
      %p63 = scmp.eq.s32.totalorder %s22, 0
      %p64 = por %p62, %p63
      %p65 = scmp.ne.s32.totalorder %s53, %s54
      %p66 = scmp.eq.s32.totalorder %s23, 1
      %p67 = por %p65, %p66
      %p69 = scmp.ne.s32.totalorder %s54, %s68
      %p70 = scmp.eq.s32.totalorder %s23, 0
      %p71 = por %p69, %p70
      %s73 = sadd.s32 %s72, 1
      %p76 = scmp.eq.s32.totalorder %s17, 1
      %p77 = scmp.ne.s32.totalorder %s72, %s74
      %p78 = scmp.eq.s32.totalorder %s17, 0
      %p79 = por %p77, %p78
      %p80 = scmp.ne.s32.totalorder %s72, %s74
      %p81 = scmp.eq.s32.totalorder %s22, 1
      %p82 = por %p80, %p81
      %p83 = scmp.ne.s32.totalorder %s74, %s75
      %p84 = scmp.eq.s32.totalorder %s22, 0
      %p85 = por %p83, %p84
      %p86 = scmp.ne.s32.totalorder %s74, %s75
      %p87 = scmp.eq.s32.totalorder %s23, 1
      %p88 = por %p86, %p87
      %p90 = scmp.ne.s32.totalorder %s75, %s89
      %p91 = scmp.eq.s32.totalorder %s23, 0
      %p92 = por %p90, %p91
      %s94 = sadd.s32 %s93, 1
      %p97 = scmp.eq.s32.totalorder %s17, 1
      %p98 = scmp.ne.s32.totalorder %s93, %s95
      %p99 = scmp.eq.s32.totalorder %s17, 0
      %p100 = por %p98, %p99
      %p101 = scmp.ne.s32.totalorder %s93, %s95
      %p102 = scmp.eq.s32.totalorder %s22, 1
      %p103 = por %p101, %p102
      %p104 = scmp.ne.s32.totalorder %s95, %s96
      %p105 = scmp.eq.s32.totalorder %s22, 0
      %p106 = por %p104, %p105
      %p107 = scmp.ne.s32.totalorder %s95, %s96
      %p108 = scmp.eq.s32.totalorder %s23, 1
      %p109 = por %p107, %p108
      %p111 = scmp.ne.s32.totalorder %s96, %s110
      %p112 = scmp.eq.s32.totalorder %s23, 0
      %p113 = por %p111, %p112
      %s115 = sadd.s32 %s114, 1
      %p118 = scmp.eq.s32.totalorder %s17, 1
      %p119 = scmp.ne.s32.totalorder %s114, %s116
      %p120 = scmp.eq.s32.totalorder %s17, 0
      %p121 = por %p119, %p120
      %p122 = scmp.ne.s32.totalorder %s114, %s116
      %p123 = scmp.eq.s32.totalorder %s22, 1
      %p124 = por %p122, %p123
      %p125 = scmp.ne.s32.totalorder %s116, %s117
      %p126 = scmp.eq.s32.totalorder %s22, 0
      %p127 = por %p125, %p126
      %p128 = scmp.ne.s32.totalorder %s116, %s117
      %p129 = scmp.eq.s32.totalorder %s23, 1
      %p130 = por %p128, %p129
      %p132 = scmp.ne.s32.totalorder %s117, %s131
      %p133 = scmp.eq.s32.totalorder %s23, 0
      %p134 = por %p132, %p133
      %s136 = sadd.s32 %s135, 1
      %p139 = scmp.eq.s32.totalorder %s17, 1
      %p140 = scmp.ne.s32.totalorder %s135, %s137
      %p141 = scmp.eq.s32.totalorder %s17, 0
      %p142 = por %p140, %p141
      %p143 = scmp.ne.s32.totalorder %s135, %s137
      %p144 = scmp.eq.s32.totalorder %s22, 1
      %p145 = por %p143, %p144
      %p146 = scmp.ne.s32.totalorder %s137, %s138
      %p147 = scmp.eq.s32.totalorder %s22, 0
      %p148 = por %p146, %p147
      %p149 = scmp.ne.s32.totalorder %s137, %s138
      %p150 = scmp.eq.s32.totalorder %s23, 1
      %p151 = por %p149, %p150
      %p153 = scmp.ne.s32.totalorder %s138, %s152
      %p154 = scmp.eq.s32.totalorder %s23, 0
      %p155 = por %p153, %p154
      %s157 = sadd.s32 %s156, 1
      %p160 = scmp.eq.s32.totalorder %s17, 1
      %p161 = scmp.ne.s32.totalorder %s156, %s158
      %p162 = scmp.eq.s32.totalorder %s17, 0
      %p163 = por %p161, %p162
      %p164 = scmp.ne.s32.totalorder %s156, %s158
      %p165 = scmp.eq.s32.totalorder %s22, 1
      %p166 = por %p164, %p165
      %p167 = scmp.ne.s32.totalorder %s158, %s159
      %p168 = scmp.eq.s32.totalorder %s22, 0
      %p169 = por %p167, %p168
      %p170 = scmp.ne.s32.totalorder %s158, %s159
      %p171 = scmp.eq.s32.totalorder %s23, 1
      %p172 = por %p170, %p171
      %p174 = scmp.ne.s32.totalorder %s159, %s173
      %p175 = scmp.eq.s32.totalorder %s23, 0
      %p176 = por %p174, %p175
      %s177 = ssub.s32 %s17, %s24
      %p178 = scmp.eq.s32.totalorder %s177, 0
      %s180 = sadd.s32 %s179, 1
      %s181 = scalar_select %p178, %s179, %s180
      %p184 = pneg %p178
      %p185 = scmp.eq.s32.totalorder %s17, 1
      %p186 = por %p184, %p185
      %p187 = scmp.ne.s32.totalorder %s179, %s182
      %p188 = scmp.eq.s32.totalorder %s17, 0
      %p189 = por %p187, %p188
      %p190 = scmp.ne.s32.totalorder %s179, %s182
      %p191 = scmp.eq.s32.totalorder %s22, 1
      %p192 = por %p190, %p191
      %p193 = scmp.ne.s32.totalorder %s182, %s183
      %p194 = scmp.eq.s32.totalorder %s22, 0
      %p195 = por %p193, %p194
      %p196 = scmp.ne.s32.totalorder %s182, %s183
      %p197 = scmp.eq.s32.totalorder %s23, 1
      %p198 = por %p196, %p197
      %p200 = scmp.ne.s32.totalorder %s183, %s199
      %p201 = scmp.eq.s32.totalorder %s23, 0
      %p202 = por %p200, %p201
      %p203 = scmp.le.s32.totalorder 1, %s17
      %p204 = scmp.lt.s32.totalorder %s17, 3
      %p205 = pnand %p203, %p204
      %p206 = pneg %p205
      // Predicated region
      $region9: #{tpu_custom_call.1} parent=5 // pred_check
        _
      $region10: #{tpu_custom_call.1} parent=5 // pred_check_branch
        %208 = sbr.rel (%p205) target = $region12
      $region11: #{tpu_custom_call.1} parent=5 // pred_region
        %s209 = ssub.s32 %s17, 1
        // Predicated region
        $region13: #{tpu_custom_call.1} parent=11 // pred_check
          %p210 = pneg %p64
        $region14: #{tpu_custom_call.1} parent=11 // pred_check_branch
          %212 = sbr.rel (%p210) target = $region16
        $region15: #{tpu_custom_call.1} parent=11 // pred_region
          _
        $region16: #{tpu_custom_call.1} parent=11 // pred_fallthru
          _
        // Predicated region
        $region17: #{tpu_custom_call.1} parent=11 // pred_check
          %p213 = pneg %p85
        $region18: #{tpu_custom_call.1} parent=11 // pred_check_branch
          %215 = sbr.rel (%p213) target = $region20
        $region19: #{tpu_custom_call.1} parent=11 // pred_region
          _
        $region20: #{tpu_custom_call.1} parent=11 // pred_fallthru
          _
        // Predicated region
        $region21: #{tpu_custom_call.1} parent=11 // pred_check
          %p216 = pneg %p106
        $region22: #{tpu_custom_call.1} parent=11 // pred_check_branch
          %218 = sbr.rel (%p216) target = $region24
        $region23: #{tpu_custom_call.1} parent=11 // pred_region
          _
        $region24: #{tpu_custom_call.1} parent=11 // pred_fallthru
          _
        // Predicated region
        $region25: #{tpu_custom_call.1} parent=11 // pred_check
          %p219 = pneg %p127
        $region26: #{tpu_custom_call.1} parent=11 // pred_check_branch
          %221 = sbr.rel (%p219) target = $region28
        $region27: #{tpu_custom_call.1} parent=11 // pred_region
          _
        $region28: #{tpu_custom_call.1} parent=11 // pred_fallthru
          _
        // Predicated region
        $region29: #{tpu_custom_call.1} parent=11 // pred_check
          %p222 = pneg %p148
        $region30: #{tpu_custom_call.1} parent=11 // pred_check_branch
          %224 = sbr.rel (%p222) target = $region32
        $region31: #{tpu_custom_call.1} parent=11 // pred_region
          _
        $region32: #{tpu_custom_call.1} parent=11 // pred_fallthru
          _
        // Predicated region
        $region33: #{tpu_custom_call.1} parent=11 // pred_check
          %p225 = pneg %p169
        $region34: #{tpu_custom_call.1} parent=11 // pred_check_branch
          %227 = sbr.rel (%p225) target = $region36
        $region35: #{tpu_custom_call.1} parent=11 // pred_region
          _
        $region36: #{tpu_custom_call.1} parent=11 // pred_fallthru
          _
      $region12: #{tpu_custom_call.1} parent=5 // pred_fallthru
        _
      %p228 = scmp.lt.s32.totalorder %s17, 2
      // Predicated region
      $region37: #{tpu_custom_call.1} parent=5 // pred_check
        %p229 = pneg %p228
      $region38: #{tpu_custom_call.1} parent=5 // pred_check_branch
        %231 = sbr.rel (%p229) target = $region40
      $region39: #{tpu_custom_call.1} parent=5 // pred_region
        // Predicated region
        $region41: #{tpu_custom_call.1} parent=39 // pred_check
          %p232 = pneg %p37
        $region42: #{tpu_custom_call.1} parent=39 // pred_check_branch
          %234 = sbr.rel (%p232) target = $region44
        $region43: #{tpu_custom_call.1} parent=39 // pred_region
          %p235 = scmp.lt.s32.totalorder %s17, 1
          %s236 = scalar_select %p235, %s17, 1
          %s237 = smul.addr %s236, 4
          %s238 = smul.addr %s237, 8
          %s239 = scalar_lea.vmem %s0, %s238
        $region44: #{tpu_custom_call.1} parent=39 // pred_fallthru
          _
      $region40: #{tpu_custom_call.1} parent=5 // pred_fallthru
        _
      %p240 = scmp.le.s32.totalorder 1, %s17
      %p241 = scmp.lt.s32.totalorder %s17, 3
      %p242 = pnand %p240, %p241
      %p243 = pneg %p242
      // Predicated region
      $region45: #{tpu_custom_call.1} parent=5 // pred_check
        _
      $region46: #{tpu_custom_call.1} parent=5 // pred_check_branch
        %245 = sbr.rel (%p242) target = $region48
      $region47: #{tpu_custom_call.1} parent=5 // pred_region
        %s246 = ssub.s32 %s17, 1
        %p247 = scmp.lt.s32.totalorder %s22, 1
        %s248 = scalar_select %p247, %s22, 1
        %s249 = smul.addr %s248, 4
        %s250 = smul.addr %s249, 8
        %s251 = scalar_lea.vmem %s0, %s250
        %p252 = pneg %p43
        %p253 = pneg %p40
        %p254 = pneg %p64
        %p255 = pneg %p61
        %p256 = pneg %p85
        %p257 = pneg %p82
        %p258 = pneg %p106
        %p259 = pneg %p103
        %p260 = pneg %p127
        %p261 = pneg %p124
        %p262 = pneg %p148
        %p263 = pneg %p145
        %p264 = pneg %p169
        %p265 = pneg %p166
        %p266 = pneg %p195
        %p267 = pneg %p192
        %s268 = sand.u32 %s182, 1
        %s269 = scalar_lea.sflag [#allocation4], %s268
        %s270 = sand.u32 %s182, 1
        %s271 = scalar_lea.vmem [#allocation3], %s270
        %p272 = scmp.lt.s32.totalorder %s22, 1
        %s273 = scalar_select %p272, %s22, 1
        %s274 = smul.addr %s273, 4
        %s275 = smul.addr %s274, 8
        %s276 = scalar_lea.vmem %s0, %s275
        %v277 = vld [vmem:[%s1] sm:$0xff]
        %v278 = vld [vmem:[%s276] sm:$0xff]
        %v279 = vld [vmem:[%s276 + $0x8] sm:$0xff]
        %v280 = vld [vmem:[%s276 + $0x10] sm:$0xff]
        %v281 = vld [vmem:[%s276 + $0x18] sm:$0xff]
        %v282 = vld [vmem:[%s2] sm:$0xff]
        %284 = vset.pattern.permute.xlu0 0
        %285 = vperm.xlu0 %284, %v282
        %v286 = vpop.permute.xlu0 %285
        %vm288 = vcmask 261120
        %v290 = vsel %vm288, %v277, 0
        %292 = vmatpush.msra.mxu0 0.0
        %293 = vmatpush.msra.mxu0 0.0
        %294 = vmatpush.msra.mxu0 0.0
        %295 = vmatpush.msra.mxu0 0.0
        %296 = vmatpush.msra.mxu0 0.0
        %297 = vmatpush.msra.mxu0 0.0
        %298 = vmatpush.msra.mxu0 0.0
        %299 = vmatpush.msra.mxu0 0.0
        %300 = vmatpush.msra.mxu0 0.0
        %301 = vmatpush.msra.mxu0 0.0
        %302 = vmatpush.msra.mxu0 0.0
        %303 = vmatpush.msra.mxu0 0.0
        %304 = vmatpush.msra.mxu0 %v281
        %305 = vmatpush.msra.mxu0 %v280
        %306 = vmatpush.msra.mxu0 %v279
        %307 = vmatpush.msra.mxu0 %v278
        %308 = vmatmul.f32.gmra.mxu0 %v290
        %v309 = vpop.f32.mrf.mxu0
        %v310 = vadd.f32 %v286, %v309
        %311 = vdwg.mxu0
        %vm312 = vcmask 130048
        %v313 = vsel %vm312, %v310, 0.0
        %314 = vadd.xlane.f32.xlu0 %v313
        %v315 = vpop.xlane.xlu0 %314
        %v316 = vrot.slane %v315, 4
        %v317 = vadd.f32 %v315, %v316
        %v318 = vrot.slane %v317, 2
        %v319 = vadd.f32 %v317, %v318
        %v320 = vrot.slane %v319, 1
        %v321 = vadd.f32 %v319, %v320
        %s322 = vtos %v321
        %v323 = vstv %s322
        %v324 = vmul.f32 %v310, %v310
        %v325 = vsel %vm312, %v324, 0.0
        %326 = vadd.xlane.f32.xlu0 %v325
        %v327 = vpop.xlane.xlu0 %326
        %v328 = vrot.slane %v327, 4
        %v329 = vadd.f32 %v327, %v328
        %v330 = vrot.slane %v329, 2
        %v331 = vadd.f32 %v329, %v330
        %v332 = vrot.slane %v331, 1
        %v333 = vadd.f32 %v331, %v332
        %s334 = vtos %v333
        %v335 = vstv %s334
        %v336 = vmul.f32 %v323, 0.0078125
        %v337 = vmul.f32 %v335, 0.0078125
        %v338 = vmul.f32 %v336, %v336
        %v339 = vsub.f32 %v337, %v338
        %v340 = vsub.f32 %v310, %v336
        %v341 = vadd.f32 %v339, 1e-05
        %v342 = vrsqrt.pop %v341
        %v343 = vmul.f32 %v342, %v341
        %v344 = vmul.f32 %v343, %v342
        %v345 = vmul.f32 0.5, %v344
        %v346 = vsub.f32 1.5, %v345
        %v347 = vmul.f32 %v342, %v346
        %vm348 = vweird.f32 %v341
        %vm349 = vweird.f32 %v342
        %vm350 = vmor %vm348, %vm349
        %v351 = vsel %vm350, %v342, %v347
        %v352 = vmul.f32 %v340, %v351
        %v353 = vld [vmem:[%s3] sm:$0xff]
        %v354 = vmul.f32 %v352, %v353
        %v355 = vld [vmem:[%s4] sm:$0xff]
        %v356 = vadd.f32 %v354, %v355
        %v357 = vld [vmem:[%s5] sm:$0xff]
        %359 = vset.pattern.permute.xlu0 0
        %360 = vperm.xlu0 %359, %v357
        %v361 = vpop.permute.xlu0 %360
        %v363 = vmul.f32 %v356, %v361
        %v364 = vsel %vm312, %v363, 0.0
        %v365 = vrot.slane %v364, 4
        %v366 = vadd.f32 %v364, %v365
        %v367 = vrot.slane %v366, 2
        %v368 = vadd.f32 %v366, %v367
        %v369 = vrot.slane %v368, 1
        %v370 = vadd.f32 %v368, %v369
        %s371 = sld [smem:[#allocation2]]
        %v372 = vstv %s371
        %v373 = vadd.f32 %v370, %v372
        %vm374 = vcmask 122880
        %375 = vst.msk [vmem:[%s271] sm:$0x1] %vm374, %v373
        %s376 = sand.u32 %s182, 1
        %s377 = scalar_lea.sflag [#allocation4], %s376
        %s378 = sand.u32 %s182, 1
        %s379 = scalar_lea.vmem [#allocation3], %s378
        // Predicated region
        $region49: #{tpu_custom_call.1} parent=47 // pred_check
          %p380 = pneg %p192
        $region50: #{tpu_custom_call.1} parent=47 // pred_check_branch
          %382 = sbr.rel (%p380) target = $region52
        $region51: #{tpu_custom_call.1} parent=47 // pred_region
          %384 = vsyncadd %s377, 0
          %s385 = scalar_lea.hbm %s7, %s22
          %s387 = sshll.u32 %s379, 4
          %s388 = int_to_ptr.vmem [resolvable:$true] %s387
          %s389 = sshll.u32 %s385, 4
          %s390 = int_to_ptr.hbm [resolvable:$true] %s389
          %392 = dma.vmem_to_hbm [thread:$0]  %s388, 16, %s390, %s377
        $region52: #{tpu_custom_call.1} parent=47 // pred_fallthru
          _
      $region48: #{tpu_custom_call.1} parent=5 // pred_fallthru
        _
      %p393 = scmp.le.s32.totalorder 2, %s17
      // Predicated region
      $region53: #{tpu_custom_call.1} parent=5 // pred_check
        %p394 = pneg %p393
      $region54: #{tpu_custom_call.1} parent=5 // pred_check_branch
        %396 = sbr.rel (%p394) target = $region56
      $region55: #{tpu_custom_call.1} parent=5 // pred_region
        %s397 = ssub.s32 %s17, 2
        // Predicated region
        $region57: #{tpu_custom_call.1} parent=55 // pred_check
          %p398 = pneg %p198
        $region58: #{tpu_custom_call.1} parent=55 // pred_check_branch
          %400 = sbr.rel (%p398) target = $region60
        $region59: #{tpu_custom_call.1} parent=55 // pred_region
          %s401 = sand.u32 %s183, 1
          %s402 = scalar_lea.sflag [#allocation4], %s401
          %s403 = sand.u32 %s183, 1
          %s404 = scalar_lea.vmem [#allocation3], %s403
          %406 = dma.done %s402, 16
        $region60: #{tpu_custom_call.1} parent=55 // pred_fallthru
          _
      $region56: #{tpu_custom_call.1} parent=5 // pred_fallthru
        _
    $region6: #{tpu_custom_call.1} parent=1 // loop_footer
      %s21 = sadd.s32 1, %s17
    $region7: #{tpu_custom_call.1} parent=1 // loop_footer_branch
      %16 = sbr.rel target = $region3
    $region8: #{tpu_custom_call.1} parent=1 // loop_exit
      _
    %407 = vsyncpa [#allocation4], 1
    %s408 = scalar_lea.sflag [#allocation4], 1
    %409 = vsyncpa %s408, 1

</llo_original>
